<compile_context>
chip_gen: v6e
topology: v6e:2x2x1
jax: 0.10.0
libtpu: 0.0.40
codegen_flags: <defaults>
</compile_context>

<pallas_src>
import functools

import jax
import jax.numpy as jnp
import numpy as np
from jax import lax
from jax.experimental import pallas as pl
from jax.experimental.pallas import tpu as pltpu


# ----------------------------------------------------------------------------
# pltpu.roll direction probe, cached per backend.  We rely on jnp.roll
# semantics (out[p] = in[p - shift]); probe once on the active backend so a
# convention mismatch can never silently corrupt the conv tap shifts.
# ----------------------------------------------------------------------------
_ROLL_CONVENTION_CACHE = {}


def _roll_matches_jnp_roll() -> bool:
    backend = jax.default_backend()
    if backend not in _ROLL_CONVENTION_CACHE:
        def probe_kernel(x_ref, o_ref):
            o_ref[...] = pltpu.roll(x_ref[...], shift=1, axis=1)

        x = jnp.arange(8 * 128, dtype=jnp.float32).reshape(8, 128)
        y = pl.pallas_call(
            probe_kernel, out_shape=jax.ShapeDtypeStruct((8, 128), jnp.float32)
        )(x)
        _ROLL_CONVENTION_CACHE[backend] = bool(
            jnp.array_equal(y, jnp.roll(x, 1, axis=1)))
    return _ROLL_CONVENTION_CACHE[backend]


def _tap_shifts(w_padded, lane_extent):
    """Lane-roll amounts so rolled[:, p] = y[:, p + dy*w_padded + dx].

    In the zero-halo layout interior reads never wrap, so the modulus only has
    to match pltpu.roll's rotation extent (the full packed lane length).
    """
    sign = -1 if _roll_matches_jnp_roll() else 1
    shifts = []
    for t in range(9):
        dy, dx = t // 3 - 1, t % 3 - 1
        shifts.append((sign * (dy * w_padded + dx)) % lane_extent)
    return tuple(shifts)


def _tree_sum(xs):
    """Pairwise reduction (shorter dependent-add chain than a serial sum)."""
    xs = list(xs)
    while len(xs) > 1:
        nxt = [xs[i] + xs[i + 1] for i in range(0, len(xs) - 1, 2)]
        if len(xs) % 2:
            nxt.append(xs[-1])
        xs = nxt
    return xs[0]


def _pick_batch_block(n, c):
    """Largest divisor of n that keeps roughly 8 sublanes of output busy."""
    target = max(1, 8 // max(c, 1))
    best = 1
    for d in range(1, min(n, target) + 1):
        if n % d == 0:
            best = d
    return best


# ----------------------------------------------------------------------------
# Pallas kernel: full forward for one packed batch group, zero-halo layout.
# ----------------------------------------------------------------------------
def depth_attention_kernel(
    x_ref,        # (1, 2C+1, L) f32  rows = [depth(C); rgb(C); interior-ones(1)]
    w_fold_ref,   # (288, 2C+1)  f32  folded conv1 taps (rows [32t, 32t+32))
    b1_ref,       # (32, 1)      f32
    w2_ref,       # (9, 32)      f32  conv2, one row per tap
    b2_ref,       # (1,)         f32  SMEM scalar
    out_ref,      # (1, C, L)    f32
    *,
    tap_shifts,   # static 9-tuple of lane-roll amounts
    channels,     # static C
):
    x = x_ref[0]                                   # (2C+1, L), halo lanes are 0
    w_fold = w_fold_ref[...]                       # (288, 2C+1)
    interior = x[2 * channels:2 * channels + 1, :]  # (1, L) interior mask row

    def rolled(v, t):
        s = tap_shifts[t]
        return v if s == 0 else pltpu.roll(v, shift=s, axis=1)

    # ---- conv1 (3x3, 64 -> 32, pad=1) with both 1x1 convs folded in ---------
    # One matmul per kernel row (3 taps) keeps the live intermediate at 96
    # rows; halo reads of each rolled tap are already zero (no masks needed).
    contribs = []
    for g in range(3):
        y = jnp.dot(w_fold[96 * g:96 * (g + 1), :], x,
                    preferred_element_type=jnp.float32)        # (96, L)
        for j in range(3):
            t = 3 * g + j
            contribs.append(rolled(y[32 * j:32 * (j + 1), :], t))
    acc = _tree_sum(contribs)                                  # (32, L)
    # Re-zero the halo lanes once so conv2 also sees zero padding.
    hidden = jnp.maximum(acc + b1_ref[...], 0.0) * interior    # (32, L)

    # ---- conv2 (3x3, 32 -> 1, pad=1), kept in f32 for tight numerics --------
    z = jnp.dot(w2_ref[...], hidden, preferred_element_type=jnp.float32)  # (9, L)
    logit = _tree_sum([rolled(z[t:t + 1, :], t) for t in range(9)])       # (1, L)
    attn = jax.nn.sigmoid(logit + b2_ref[0])                              # (1, L)

    # ---- weighted_depth_feat = depth * attention_map ------------------------
    # depth (raw input) is rows [0, C); halo/pad lanes are zero so the store
    # stays lane-dense and the wrapper just slices out the interior.
    out_ref[0] = x[0:channels, :] * attn


# ----------------------------------------------------------------------------
# Wrapper: NCHW in / NCHW out, weight folding, halo layout, pallas_call.
# ----------------------------------------------------------------------------
def depth_attention_forward(rgb_nchw, depth_nchw, params):
    N, C, H, W = rgb_nchw.shape
    Hp, Wp = H + 2, W + 2                       # zero-halo spatial extent
    hwp = Hp * Wp
    l_pad = ((hwp + 127) // 128) * 128          # 128-aligned lanes per element
    b_blk = _pick_batch_block(N, C)             # elements packed onto lanes
    G = N // b_blk
    L = b_blk * l_pad
    R = 2 * C + 1                               # depth(C) + rgb(C) + ones(1)

    # ---- fold the two 1x1 convs into conv1's 9 taps -------------------------
    w_rgb_m = jnp.transpose(params["w_rgb"]).astype(jnp.float32)     # (32, C)
    w_dep_m = jnp.transpose(params["w_depth"]).astype(jnp.float32)   # (32, C)
    w1_taps = jnp.transpose(params["w1"].astype(jnp.float32)
                            .reshape(9, 64, 32), (0, 2, 1))          # (9,32,64)
    w1_rgb_part = w1_taps[:, :, :32]            # acts on rgb_feat channels
    w1_dep_part = w1_taps[:, :, 32:]            # acts on depth_feat channels
    fold_rgb = jnp.einsum("tof,fc->toc", w1_rgb_part, w_rgb_m)       # (9,32,C)
    fold_dep = jnp.einsum("tof,fc->toc", w1_dep_part, w_dep_m)       # (9,32,C)
    fold_bias = (jnp.einsum("tof,f->to", w1_rgb_part,
                            params["b_rgb"].astype(jnp.float32))
                 + jnp.einsum("tof,f->to", w1_dep_part,
                              params["b_depth"].astype(jnp.float32)))  # (9,32)
    # Column order matches the input row order [depth, rgb, ones].
    w_fold = jnp.concatenate(
        [fold_dep, fold_rgb, fold_bias[..., None]], axis=-1).reshape(288, R)

    b1 = params["b1"].reshape(32, 1).astype(jnp.float32)
    w2 = params["w2"].reshape(9, 32).astype(jnp.float32)
    b2 = params["b2"].reshape(1).astype(jnp.float32)    # SMEM scalar

    # ---- zero-halo, flattened, 128-aligned lane layout ----------------------
    interior2d = np.zeros((Hp, Wp), np.float32)
    interior2d[1:H + 1, 1:W + 1] = 1.0
    interior_flat = np.zeros((l_pad,), np.float32)
    interior_flat[:hwp] = interior2d.reshape(-1)

    def to_lanes(x_nchw):
        xp = jnp.pad(x_nchw.astype(jnp.float32),
                     ((0, 0), (0, 0), (1, 1), (1, 1)))       # zero halo
        xp = xp.reshape(N, C, hwp)
        return jnp.pad(xp, ((0, 0), (0, 0), (0, l_pad - hwp)))

    ones_row = jnp.broadcast_to(jnp.asarray(interior_flat), (N, 1, l_pad))
    x_all = jnp.concatenate(
        [to_lanes(depth_nchw), to_lanes(rgb_nchw), ones_row], axis=1)  # (N,R,l_pad)
    # Pack b_blk elements onto the lane axis; per-element halos keep rolls safe.
    x_all = x_all.reshape(G, b_blk, R, l_pad).transpose(0, 2, 1, 3)
    x_all = x_all.reshape(G, R, L)

    kernel = functools.partial(depth_attention_kernel,
                               tap_shifts=_tap_shifts(Wp, L), channels=C)

    # TODO(synk): for large H*W add a 'parallel' spatial grid axis (>=512-lane
    # tiles with a +-Wp halo via pl.Element offsets) and raise vmem_limit_bytes
    # so the 96-row tap-group intermediate stays under ~24-32 MiB on v7x.
    out = pl.pallas_call(
        kernel,
        out_shape=jax.ShapeDtypeStruct((G, C, L), jnp.float32),
        grid_spec=pltpu.PrefetchScalarGridSpec(
            num_scalar_prefetch=0,
            grid=(G,),
            in_specs=[
                pl.BlockSpec((1, R, L), lambda g: (g, 0, 0)),         # x
                pl.BlockSpec((288, R), lambda g: (0, 0)),             # w_fold
                pl.BlockSpec((32, 1), lambda g: (0, 0)),              # b1
                pl.BlockSpec((9, 32), lambda g: (0, 0)),              # w2
                pl.BlockSpec(memory_space=pltpu.MemorySpace.SMEM),    # b2
            ],
            out_specs=pl.BlockSpec((1, C, L), lambda g: (g, 0, 0)),
        ),
        compiler_params=pltpu.CompilerParams(
            dimension_semantics=("parallel",)),
    )(x_all, w_fold, b1, w2, b2)

    # ---- unpack lanes -> NCHW (interior slice of the padded layout) ---------
    out = out.reshape(G, C, b_blk, l_pad).transpose(0, 2, 1, 3)
    out = out.reshape(N, C, l_pad)[:, :, :hwp].reshape(N, C, Hp, Wp)
    return out[:, :, 1:H + 1, 1:W + 1]


# ----------------------------------------------------------------------------
# Deterministic parameter init (shapes implied by the PyTorch __init__),
# stored in HWIO / (in, out) layouts.
# ----------------------------------------------------------------------------
def init_params(C, key):
    ks = jax.random.split(key, 8)
    s = 0.1
    return dict(
        w_rgb=jax.random.normal(ks[0], (C, 32), jnp.float32) * s,
        b_rgb=jax.random.normal(ks[1], (32,), jnp.float32) * s,
        w_depth=jax.random.normal(ks[2], (C, 32), jnp.float32) * s,
        b_depth=jax.random.normal(ks[3], (32,), jnp.float32) * s,
        w1=jax.random.normal(ks[4], (3, 3, 64, 32), jnp.float32) * s,
        b1=jax.random.normal(ks[5], (32,), jnp.float32) * s,
        w2=jax.random.normal(ks[6], (3, 3, 32, 1), jnp.float32) * s,
        b2=jax.random.normal(ks[7], (1,), jnp.float32) * s,
    )


# ----------------------------------------------------------------------------
# Pure-JAX reference (NHWC convs via lax.conv_general_dilated), f32 throughout.
# ----------------------------------------------------------------------------
def reference_forward(rgb_nchw, depth_nchw, params):
    rgb = jnp.transpose(rgb_nchw, (0, 2, 3, 1)).astype(jnp.float32)
    depth = jnp.transpose(depth_nchw, (0, 2, 3, 1)).astype(jnp.float32)

    def conv(x, w_hwio, b, pad):
        y = lax.conv_general_dilated(
            x, w_hwio, (1, 1), pad,
            dimension_numbers=("NHWC", "HWIO", "NHWC"),
            precision=lax.Precision.HIGHEST)
        return y + b

    rgb_feat = conv(rgb, params["w_rgb"][None, None], params["b_rgb"],
                    [(0, 0), (0, 0)])
    depth_feat = conv(depth, params["w_depth"][None, None], params["b_depth"],
                      [(0, 0), (0, 0)])
    combined = jnp.concatenate([rgb_feat, depth_feat], axis=-1)
    h = jax.nn.relu(conv(combined, params["w1"], params["b1"],
                         [(1, 1), (1, 1)]))
    logit = conv(h, params["w2"], params["b2"], [(1, 1), (1, 1)])
    attn = jax.nn.sigmoid(logit)
    out = depth * attn
    return jnp.transpose(out, (0, 3, 1, 2))


if __name__ == "__main__":
    N, C, H, W = 2, 4, 16, 16  # DepthAttentionModel(channel=4), 16x16 spatial

    key = jax.random.PRNGKey(0)
    k_rgb, k_depth = jax.random.split(key)
    rgb = jax.random.normal(k_rgb, (N, C, H, W), jnp.float32)
    depth = jax.random.normal(k_depth, (N, C, H, W), jnp.float32)

    params = init_params(C, jax.random.PRNGKey(42))

    out = depth_attention_forward(rgb, depth, params)
    out = jax.block_until_ready(out)

    ref = reference_forward(rgb, depth, params)
    assert out.shape == (N, C, H, W)
    # All matmuls are f32 now -> much tighter tolerance than the old bf16 path.
    np.testing.assert_allclose(np.asarray(out), np.asarray(ref),
                               rtol=2e-3, atol=2e-3)
    print("KERNEL_OK")
</pallas_src>

<mosaic_0001>
module attributes {stable_mosaic.version = 11 : i64} {
  func.func @probe_kernel(%arg0: memref<8x128xf32, #tpu.memory_space<vmem>>, %arg1: memref<8x128xf32, #tpu.memory_space<vmem>>) attributes {dimension_semantics = [], scalar_prefetch = 0 : i64, scratch_operands = 0 : i64, tpu.core_type = #tpu.core_type<tc>} {
    %c0 = arith.constant 0 : index
    %c0_0 = arith.constant 0 : index
    %0 = vector.load %arg0[%c0, %c0_0] : memref<8x128xf32, #tpu.memory_space<vmem>>, vector<8x128xf32>
    %c1_i32 = arith.constant 1 : i32
    %1 = tpu.dynamic_rotate %0 by %c1_i32 dim 1 : vector<8x128xf32>, i32 -> vector<8x128xf32>
    %c0_1 = arith.constant 0 : index
    %c0_2 = arith.constant 0 : index
    %2 = vector.load %arg1[%c0_1, %c0_2] : memref<8x128xf32, #tpu.memory_space<vmem>>, vector<8x128xf32>
    tpu.vector_store %arg1[%c0_1, %c0_2], %1 {strides = array<i32>} : memref<8x128xf32, #tpu.memory_space<vmem>>, vector<8x128xf32>,
    return
  }
}

</mosaic_0001>

<llo_original>
// kernel: tpu_custom_call.1
$region0: #{tpu_custom_call.1}
  #allocation0 [shape = 'u32[]', space=smem, size = 0x4, offset = 0x4, fixed_abs, tag = 'smem constant byte address 0x4 - core index']
  #allocation1 [shape = 'u32[144,128]{1,0:T(1,128)}', space=vmem, size = 0x12000, scoped, tag = 'internal scratch']
  %s0 = inlined_call_operand.hbm [shape: f32[8,128], index: 0, kind: input, shape index: {}]
  %s1 = inlined_call_operand.hbm [shape: f32[8,128], index: 1, kind: output, shape index: {}]
  %s2 = sld [smem:[#allocation0]]
  $region18: #{tpu_custom_call.1} parent=0
    _
  %s4 = ssub.s32 1, %s2
  %s5 = scalar_select 0, %s4, %s2
  $region1: #{tpu_custom_call.1} parent=0
    #allocation2 [shape = 'u8[4096]{0}', space=vmem, size = 0x1000, scoped, tag = 'input window, operand 0, single buffered']
    #allocation3 [shape = 's32[1]{0}', space=sflag, size = 0x4, scoped, tag = 'scoped memory for tpu_custom_call.1']
    #allocation4 [shape = 's32[1]{0}', space=sflag, size = 0x4, scoped, tag = 'scoped memory for tpu_custom_call.1']
    #allocation5 [shape = 'u8[4096]{0}', space=vmem, size = 0x1000, scoped, tag = 'output window, operand 0, single buffered']
    %6 = vsyncpa [#allocation3], 0
    %7 = vsyncpa [#allocation4], 0
    // Predicated region
    $region2: #{tpu_custom_call.1} parent=1 // pred_check
      _
    $region3: #{tpu_custom_call.1} parent=1 // pred_check_branch
      %9 = sbr.rel (0) target = $region5
    $region4: #{tpu_custom_call.1} parent=1 // pred_region
      %s11 = ssub.s32 128, 128
      %12 = vsyncadd [#allocation3], %s11
      %s14 = sshll.u32 [#allocation2], 4
      %s15 = int_to_ptr.vmem [resolvable:$true] %s14
      %17 = dma.hbm_to_vmem [thread:$0]  %s0, 128, %s15, [#allocation3]
    $region5: #{tpu_custom_call.1} parent=1 // pred_fallthru
      _
    // Predicated region
    $region6: #{tpu_custom_call.1} parent=1 // pred_check
      _
    $region7: #{tpu_custom_call.1} parent=1 // pred_check_branch
      %19 = sbr.rel (0) target = $region9
    $region8: #{tpu_custom_call.1} parent=1 // pred_region
      %20 = dma.done [#allocation3], 128
    $region9: #{tpu_custom_call.1} parent=1 // pred_fallthru
      _
    %v21 = vld [vmem:[#allocation2] sm:$0xff]
    %22 = vrot.lane.b32.xlu0 %v21, 1
    %v23 = vpop.permute.xlu0 %22
    %24 = vst [vmem:[#allocation5] sm:$0xff] %v23
    // Predicated region
    $region10: #{tpu_custom_call.1} parent=1 // pred_check
      _
    $region11: #{tpu_custom_call.1} parent=1 // pred_check_branch
      %26 = sbr.rel (0) target = $region13
    $region12: #{tpu_custom_call.1} parent=1 // pred_region
      %s28 = ssub.s32 128, 128
      %29 = vsyncadd [#allocation4], %s28
      %s31 = sshll.u32 [#allocation5], 4
      %s32 = int_to_ptr.vmem [resolvable:$true] %s31
      %34 = dma.vmem_to_hbm [thread:$0]  %s32, 128, %s1, [#allocation4]
    $region13: #{tpu_custom_call.1} parent=1 // pred_fallthru
      _
    // Predicated region
    $region14: #{tpu_custom_call.1} parent=1 // pred_check
      _
    $region15: #{tpu_custom_call.1} parent=1 // pred_check_branch
      %36 = sbr.rel (0) target = $region17
    $region16: #{tpu_custom_call.1} parent=1 // pred_region
      %37 = dma.done [#allocation4], 128
    $region17: #{tpu_custom_call.1} parent=1 // pred_fallthru
      _
    %38 = vsyncpa [#allocation3], 1
    %39 = vsyncpa [#allocation4], 1

</llo_original>
